<compile_context>
chip_gen: v5e
topology: v5e:2x2
jax: 0.10.0
libtpu: 0.0.40
codegen_flags: <defaults>
</compile_context>

<pallas_src>
import functools

import jax
import jax.numpy as jnp
from jax import lax
from jax.experimental import pallas as pl
from jax.experimental.pallas import tpu as pltpu


def _shuffleconv_kernel(xph_ref, wdw_ref, bdw_ref, wpw_ref, bpw_ref, alpha_ref,
                        out_ref, *, cg, cog, kernel_size, stride, hp, lw):
    """Fused depthwise KxK stride-s conv + PReLU + 1x1 conv + PReLU.

    xph_ref : (S*S*Cg, hp+PADH, lw+PADW) VMEM - stride-phase images, one per
              (phase, in-channel); lanes pack this step's (batch, group)
              segments side by side (Wp cols each) plus tail padding.
    wdw_ref : (Cg*K*K,) SMEM - depthwise weights (ci-major, kh*K+kw minor).
    bdw_ref : (Cg,)     SMEM - depthwise bias.
    wpw_ref : (Cog*Cg,) SMEM - 1x1 weights (co-major).
    bpw_ref : (Cog,)    SMEM - 1x1 bias.
    alpha_ref: (2,)     SMEM - PReLU alphas.
    out_ref : (Cog, hp, lw) VMEM - lane/sublane-dense output block.
    """
    k = kernel_size
    kk = k * k
    a1 = alpha_ref[0]
    a2 = alpha_ref[1]

    # 1x1 accumulators initialized with the pointwise bias (Cog live tiles).
    pw = [jnp.full((hp, lw), bpw_ref[co], dtype=jnp.float32) for co in range(cog)]

    for ci in range(cg):
        # Depthwise conv for channel ci: unrolled taps, each a static slice of
        # the matching stride-phase image -> pure VPU scalar*vector MACs (no
        # cross-lane reduction, no MXU traffic).
        acc = jnp.full((hp, lw), bdw_ref[ci], dtype=jnp.float32)
        for kh in range(k):
            for kw in range(k):
                p = (kh % stride) * stride + (kw % stride)
                a = kh // stride                      # sublane (row) shift
                b = kw // stride                      # lane (col) shift
                tap = xph_ref[p * cg + ci, a:a + hp, b:b + lw]
                acc = acc + wdw_ref[ci * kk + kh * k + kw] * tap.astype(jnp.float32)
        dwc = jnp.where(acc >= 0, acc, a1 * acc)      # PReLU 1 (depthwise)

        # Stream this depthwise channel straight into every pointwise
        # accumulator: live (hp, lw) tiles stay at cog+1 regardless of cg.
        for co in range(cog):
            pw[co] = pw[co] + wpw_ref[co * cg + ci] * dwc

    # 1x1 epilogue + PReLU 2.  Cg/Cog are tiny here, so unrolled VPU MACs beat
    # a (Cog x Cg)@(Cg x H*W) MXU matmul; only switch this stage to jnp.dot on
    # the MXU past roughly Cg, Cog >= 16-32.
    for co in range(cog):
        z = pw[co]
        out_ref[co] = jnp.where(z >= 0, z, a2 * z).astype(out_ref.dtype)


def shuffle_conv2d(x, params, *, groups=2, kernel_size=3, stride=2,
                   lane_target=2048):
    """x: (N, C, H, W) float32 -> (N, oup, Ho, Wo).

    Matches the PyTorch ShuffleConv2d forward exactly: the same depthwise /
    pointwise weights are reused for every group (the module reuses
    self.shuffle_conv on each chunk), followed by channel_shuffle(groups).
    """
    wdw, bdw = params["wdw"], params["bdw"]
    wpw, bpw = params["wpw"], params["bpw"]
    alpha1, alpha2 = params["alpha1"], params["alpha2"]

    N, C, H, W = x.shape
    K, S, G = kernel_size, stride, groups
    Cg = C // G
    Cog = wpw.shape[0]
    Ho = (H - K) // S + 1
    Wo = (W - K) // S + 1
    Hp = -(-H // S)                   # live phase-image rows
    Wp = -(-W // S)                   # live phase-image cols per segment
    PADH = (K - 1) // S               # sublane halo for row-shifted taps
    PADW = (K - 1) // S               # lane halo for col-shifted taps
    HP8 = -(-Hp // 8) * 8             # sublane-dense compute height
    HIN = HP8 + PADH                  # input phase-image height (incl. halo)

    # Grid blocking over whole batch items: each step handles NPB images of
    # all G groups => NPB*G*Wp live lanes.  ~lane_target lanes/step amortizes
    # the ~0.35us per-step pipeline overhead, restores DMA/compute overlap and
    # gives v7x's two TensorCores independent "parallel" steps.  Demo -> NBLK=1.
    lanes_per_item = G * Wp
    NPB = max(1, min(N, lane_target // max(1, lanes_per_item)))
    NBLK = -(-N // NPB)
    N_pad = NBLK * NPB
    PC = S * S * Cg                   # (phase, in-channel) slabs per step
    LWB = NPB * G * Wp                # live lanes per step
    LWO = -(-LWB // 128) * 128        # lane-dense output width per step
    WIN = LWO + PADW                  # input lane width (incl. tap halo)

    # ---- glue in (single pad / reshape / transpose / reshape / pad):
    # space-to-depth into stride-phase images; lanes pack (NPB, G, Wp);
    # the leading axis is the grid's batch-chunk index.
    xp = jnp.pad(x, ((0, N_pad - N), (0, 0), (0, HIN * S - H), (0, Wp * S - W)))
    xp = xp.reshape(NBLK, NPB, G, Cg, HIN, S, Wp, S)
    xp = xp.transpose(0, 5, 7, 3, 4, 1, 2, 6)      # (NBLK,S,S,Cg,HIN,NPB,G,Wp)
    xp = xp.reshape(NBLK, PC, HIN, LWB)
    xp = jnp.pad(xp, ((0, 0), (0, 0), (0, 0), (0, WIN - LWB)))

    # Small parameters live in SMEM as flat scalar tables (not compile-time
    # constants, not double-buffered VMEM blocks).
    wdw_s = wdw.reshape(-1).astype(jnp.float32)    # (Cg*K*K,)
    bdw_s = bdw.reshape(-1).astype(jnp.float32)    # (Cg,)
    wpw_s = wpw.reshape(-1).astype(jnp.float32)    # (Cog*Cg,)
    bpw_s = bpw.reshape(-1).astype(jnp.float32)    # (Cog,)
    alphas = jnp.stack([jnp.asarray(alpha1, jnp.float32),
                        jnp.asarray(alpha2, jnp.float32)])

    kernel = functools.partial(_shuffleconv_kernel, cg=Cg, cog=Cog,
                               kernel_size=K, stride=S, hp=HP8, lw=LWO)

    smem = pl.BlockSpec(memory_space=pltpu.MemorySpace.SMEM)
    out = pl.pallas_call(
        kernel,
        out_shape=jax.ShapeDtypeStruct((NBLK, Cog, HP8, LWO), x.dtype),
        grid=(NBLK,),
        in_specs=[
            pl.BlockSpec((None, PC, HIN, WIN), lambda i: (i, 0, 0, 0)),
            smem, smem, smem, smem, smem,
        ],
        out_specs=pl.BlockSpec((None, Cog, HP8, LWO), lambda i: (i, 0, 0, 0)),
        compiler_params=pltpu.CompilerParams(
            dimension_semantics=("parallel",)),
    )(xp, wdw_s, bdw_s, wpw_s, bpw_s, alphas)

    # ---- glue out: drop garbage rows/lanes, unpack lane segments, and emit
    # the group-concat + channel_shuffle(groups) order (channel = co*G + g).
    out = out[:, :, :Ho, :LWB].reshape(NBLK, Cog, Ho, NPB, G, Wp)[..., :Wo]
    out = out.transpose(0, 3, 1, 4, 2, 5)          # (NBLK,NPB,Cog,G,Ho,Wo)
    out = out.reshape(N_pad, Cog * G, Ho, Wo)
    return out[:N]


def shuffle_conv2d_ref(x, params, *, groups=2, kernel_size=3, stride=2):
    """Pure-JAX reference mirroring the PyTorch forward exactly."""
    wdw, bdw = params["wdw"], params["bdw"]
    wpw, bpw = params["wpw"], params["bpw"]
    a1, a2 = params["alpha1"], params["alpha2"]
    N, C, H, W = x.shape
    Cg = C // groups
    outs = []
    for g in range(groups):
        xc = x[:, g * Cg:(g + 1) * Cg]
        y = lax.conv_general_dilated(
            xc, wdw, window_strides=(stride, stride), padding="VALID",
            dimension_numbers=("NCHW", "OIHW", "NCHW"),
            feature_group_count=Cg)
        y = y + bdw[None, :, None, None]
        y = jnp.where(y >= 0, y, a1 * y)
        z = lax.conv_general_dilated(
            y, wpw, window_strides=(1, 1), padding="VALID",
            dimension_numbers=("NCHW", "OIHW", "NCHW"))
        z = z + bpw[None, :, None, None]
        z = jnp.where(z >= 0, z, a2 * z)
        outs.append(z)
    out = jnp.concatenate(outs, axis=1)
    n, c, h, w = out.shape
    out = out.reshape(n, groups, c // groups, h, w)
    out = out.transpose(0, 2, 1, 3, 4).reshape(n, c, h, w)
    return out


if __name__ == "__main__":
    inp, oup, groups, K, stride = 4, 8, 2, 3, 2
    N, H, W = 2, 16, 16
    Cg, Cog = inp // groups, oup // groups

    key = jax.random.PRNGKey(0)
    k0, k1, k2, k3, k4 = jax.random.split(key, 5)
    x = jax.random.normal(k0, (N, inp, H, W), jnp.float32)
    params = dict(
        wdw=0.2 * jax.random.normal(k1, (Cg, 1, K, K), jnp.float32),   # depthwise Conv2d weight
        bdw=0.1 * jax.random.normal(k2, (Cg,), jnp.float32),           # depthwise bias
        wpw=0.2 * jax.random.normal(k3, (Cog, Cg, 1, 1), jnp.float32), # 1x1 Conv2d weight
        bpw=0.1 * jax.random.normal(k4, (Cog,), jnp.float32),          # 1x1 bias
        alpha1=0.25,  # PReLU default init (single shared parameter)
        alpha2=0.25,
    )

    out = shuffle_conv2d(x, params, groups=groups, kernel_size=K, stride=stride)
    out = jax.block_until_ready(out)

    ref = shuffle_conv2d_ref(x, params, groups=groups, kernel_size=K, stride=stride)
    Ho = (H - K) // stride + 1
    assert out.shape == (N, oup, Ho, Ho), out.shape
    assert jnp.allclose(out, ref, atol=1e-4, rtol=1e-4), "mismatch vs reference"
    print("KERNEL_OK")
</pallas_src>

<mosaic_0001>
module attributes {stable_mosaic.version = 11 : i64} {
  func.func @_shuffleconv_kernel(%arg0: i32, %arg1: memref<1x8x9x129xf32, #tpu.memory_space<vmem>>, %arg2: memref<18xf32, #tpu.memory_space<smem>>, %arg3: memref<2xf32, #tpu.memory_space<smem>>, %arg4: memref<8xf32, #tpu.memory_space<smem>>, %arg5: memref<4xf32, #tpu.memory_space<smem>>, %arg6: memref<2xf32, #tpu.memory_space<smem>>, %arg7: memref<1x4x8x128xf32, #tpu.memory_space<vmem>>) attributes {dimension_semantics = [#tpu.dimension_semantics<parallel>], iteration_bounds = array<i64: 1>, scalar_prefetch = 0 : i64, scratch_operands = 0 : i64, tpu.core_type = #tpu.core_type<tc>, window_params = [{transform_indices = @transform_0, window_bounds = array<i64: 1, 8, 9, 129>}, {transform_indices = @transform_1, window_bounds = array<i64: 18>}, {transform_indices = @transform_2, window_bounds = array<i64: 2>}, {transform_indices = @transform_3, window_bounds = array<i64: 8>}, {transform_indices = @transform_4, window_bounds = array<i64: 4>}, {transform_indices = @transform_5, window_bounds = array<i64: 2>}, {transform_indices = @transform_6, window_bounds = array<i64: 1, 4, 8, 128>}]} {
    %c0 = arith.constant 0 : index
    %0 = memref.load %arg6[%c0] : memref<2xf32, #tpu.memory_space<smem>>
    %c1 = arith.constant 1 : index
    %1 = memref.load %arg6[%c1] : memref<2xf32, #tpu.memory_space<smem>>
    %c0_0 = arith.constant 0 : index
    %2 = memref.load %arg5[%c0_0] : memref<4xf32, #tpu.memory_space<smem>>
    %3 = vector.broadcast %2 : f32 to vector<8x128xf32>
    %c1_1 = arith.constant 1 : index
    %4 = memref.load %arg5[%c1_1] : memref<4xf32, #tpu.memory_space<smem>>
    %5 = vector.broadcast %4 : f32 to vector<8x128xf32>
    %c2 = arith.constant 2 : index
    %6 = memref.load %arg5[%c2] : memref<4xf32, #tpu.memory_space<smem>>
    %7 = vector.broadcast %6 : f32 to vector<8x128xf32>
    %c3 = arith.constant 3 : index
    %8 = memref.load %arg5[%c3] : memref<4xf32, #tpu.memory_space<smem>>
    %9 = vector.broadcast %8 : f32 to vector<8x128xf32>
    %c0_2 = arith.constant 0 : index
    %10 = memref.load %arg3[%c0_2] : memref<2xf32, #tpu.memory_space<smem>>
    %11 = vector.broadcast %10 : f32 to vector<8x128xf32>
    %c0_3 = arith.constant 0 : index
    %c0_4 = arith.constant 0 : index
    %c0_5 = arith.constant 0 : index
    %c0_6 = arith.constant 0 : index
    %12 = vector.load %arg1[%c0_3, %c0_4, %c0_5, %c0_6] : memref<1x8x9x129xf32, #tpu.memory_space<vmem>>, vector<1x1x8x128xf32>
    %13 = vector.shape_cast %12 : vector<1x1x8x128xf32> to vector<8x128xf32>
    %c0_7 = arith.constant 0 : index
    %14 = memref.load %arg2[%c0_7] : memref<18xf32, #tpu.memory_space<smem>>
    %15 = vector.broadcast %14 : f32 to vector<8x128xf32>
    %16 = arith.mulf %15, %13 : vector<8x128xf32>
    %17 = arith.addf %11, %16 : vector<8x128xf32>
    %c0_8 = arith.constant 0 : index
    %c2_9 = arith.constant 2 : index
    %c0_10 = arith.constant 0 : index
    %c0_11 = arith.constant 0 : index
    %18 = vector.load %arg1[%c0_8, %c2_9, %c0_10, %c0_11] : memref<1x8x9x129xf32, #tpu.memory_space<vmem>>, vector<1x1x8x128xf32>
    %19 = vector.shape_cast %18 : vector<1x1x8x128xf32> to vector<8x128xf32>
    %c1_12 = arith.constant 1 : index
    %20 = memref.load %arg2[%c1_12] : memref<18xf32, #tpu.memory_space<smem>>
    %21 = vector.broadcast %20 : f32 to vector<8x128xf32>
    %22 = arith.mulf %21, %19 : vector<8x128xf32>
    %23 = arith.addf %17, %22 : vector<8x128xf32>
    %c0_13 = arith.constant 0 : index
    %c0_14 = arith.constant 0 : index
    %c0_15 = arith.constant 0 : index
    %c1_16 = arith.constant 1 : index
    %24 = vector.load %arg1[%c0_13, %c0_14, %c0_15, %c1_16] : memref<1x8x9x129xf32, #tpu.memory_space<vmem>>, vector<1x1x8x128xf32>
    %25 = vector.shape_cast %24 : vector<1x1x8x128xf32> to vector<8x128xf32>
    %c2_17 = arith.constant 2 : index
    %26 = memref.load %arg2[%c2_17] : memref<18xf32, #tpu.memory_space<smem>>
    %27 = vector.broadcast %26 : f32 to vector<8x128xf32>
    %28 = arith.mulf %27, %25 : vector<8x128xf32>
    %29 = arith.addf %23, %28 : vector<8x128xf32>
    %c0_18 = arith.constant 0 : index
    %c4 = arith.constant 4 : index
    %c0_19 = arith.constant 0 : index
    %c0_20 = arith.constant 0 : index
    %30 = vector.load %arg1[%c0_18, %c4, %c0_19, %c0_20] : memref<1x8x9x129xf32, #tpu.memory_space<vmem>>, vector<1x1x8x128xf32>
    %31 = vector.shape_cast %30 : vector<1x1x8x128xf32> to vector<8x128xf32>
    %c3_21 = arith.constant 3 : index
    %32 = memref.load %arg2[%c3_21] : memref<18xf32, #tpu.memory_space<smem>>
    %33 = vector.broadcast %32 : f32 to vector<8x128xf32>
    %34 = arith.mulf %33, %31 : vector<8x128xf32>
    %35 = arith.addf %29, %34 : vector<8x128xf32>
    %c0_22 = arith.constant 0 : index
    %c6 = arith.constant 6 : index
    %c0_23 = arith.constant 0 : index
    %c0_24 = arith.constant 0 : index
    %36 = vector.load %arg1[%c0_22, %c6, %c0_23, %c0_24] : memref<1x8x9x129xf32, #tpu.memory_space<vmem>>, vector<1x1x8x128xf32>
    %37 = vector.shape_cast %36 : vector<1x1x8x128xf32> to vector<8x128xf32>
    %c4_25 = arith.constant 4 : index
    %38 = memref.load %arg2[%c4_25] : memref<18xf32, #tpu.memory_space<smem>>
    %39 = vector.broadcast %38 : f32 to vector<8x128xf32>
    %40 = arith.mulf %39, %37 : vector<8x128xf32>
    %41 = arith.addf %35, %40 : vector<8x128xf32>
    %c0_26 = arith.constant 0 : index
    %c4_27 = arith.constant 4 : index
    %c0_28 = arith.constant 0 : index
    %c1_29 = arith.constant 1 : index
    %42 = vector.load %arg1[%c0_26, %c4_27, %c0_28, %c1_29] : memref<1x8x9x129xf32, #tpu.memory_space<vmem>>, vector<1x1x8x128xf32>
    %43 = vector.shape_cast %42 : vector<1x1x8x128xf32> to vector<8x128xf32>
    %c5 = arith.constant 5 : index
    %44 = memref.load %arg2[%c5] : memref<18xf32, #tpu.memory_space<smem>>
    %45 = vector.broadcast %44 : f32 to vector<8x128xf32>
    %46 = arith.mulf %45, %43 : vector<8x128xf32>
    %47 = arith.addf %41, %46 : vector<8x128xf32>
    %c0_30 = arith.constant 0 : index
    %c0_31 = arith.constant 0 : index
    %c1_32 = arith.constant 1 : index
    %c0_33 = arith.constant 0 : index
    %48 = vector.load %arg1[%c0_30, %c0_31, %c1_32, %c0_33] : memref<1x8x9x129xf32, #tpu.memory_space<vmem>>, vector<1x1x8x128xf32>
    %49 = vector.shape_cast %48 : vector<1x1x8x128xf32> to vector<8x128xf32>
    %c6_34 = arith.constant 6 : index
    %50 = memref.load %arg2[%c6_34] : memref<18xf32, #tpu.memory_space<smem>>
    %51 = vector.broadcast %50 : f32 to vector<8x128xf32>
    %52 = arith.mulf %51, %49 : vector<8x128xf32>
    %53 = arith.addf %47, %52 : vector<8x128xf32>
    %c0_35 = arith.constant 0 : index
    %c2_36 = arith.constant 2 : index
    %c1_37 = arith.constant 1 : index
    %c0_38 = arith.constant 0 : index
    %54 = vector.load %arg1[%c0_35, %c2_36, %c1_37, %c0_38] : memref<1x8x9x129xf32, #tpu.memory_space<vmem>>, vector<1x1x8x128xf32>
    %55 = vector.shape_cast %54 : vector<1x1x8x128xf32> to vector<8x128xf32>
    %c7 = arith.constant 7 : index
    %56 = memref.load %arg2[%c7] : memref<18xf32, #tpu.memory_space<smem>>
    %57 = vector.broadcast %56 : f32 to vector<8x128xf32>
    %58 = arith.mulf %57, %55 : vector<8x128xf32>
    %59 = arith.addf %53, %58 : vector<8x128xf32>
    %c0_39 = arith.constant 0 : index
    %c0_40 = arith.constant 0 : index
    %c1_41 = arith.constant 1 : index
    %c1_42 = arith.constant 1 : index
    %60 = vector.load %arg1[%c0_39, %c0_40, %c1_41, %c1_42] : memref<1x8x9x129xf32, #tpu.memory_space<vmem>>, vector<1x1x8x128xf32>
    %61 = vector.shape_cast %60 : vector<1x1x8x128xf32> to vector<8x128xf32>
    %c8 = arith.constant 8 : index
    %62 = memref.load %arg2[%c8] : memref<18xf32, #tpu.memory_space<smem>>
    %63 = vector.broadcast %62 : f32 to vector<8x128xf32>
    %64 = arith.mulf %63, %61 : vector<8x128xf32>
    %65 = arith.addf %59, %64 : vector<8x128xf32>
    %cst = arith.constant 0.000000e+00 : f32
    %66 = vector.broadcast %cst : f32 to vector<8x128xf32>
    %67 = arith.cmpf oge, %65, %66 : vector<8x128xf32>
    %68 = vector.broadcast %0 : f32 to vector<8x128xf32>
    %69 = arith.mulf %68, %65 : vector<8x128xf32>
    %70 = arith.select %67, %65, %69 : vector<8x128xi1>, vector<8x128xf32>
    %c0_43 = arith.constant 0 : index
    %71 = memref.load %arg4[%c0_43] : memref<8xf32, #tpu.memory_space<smem>>
    %72 = vector.broadcast %71 : f32 to vector<8x128xf32>
    %73 = arith.mulf %72, %70 : vector<8x128xf32>
    %74 = arith.addf %3, %73 : vector<8x128xf32>
    %c2_44 = arith.constant 2 : index
    %75 = memref.load %arg4[%c2_44] : memref<8xf32, #tpu.memory_space<smem>>
    %76 = vector.broadcast %75 : f32 to vector<8x128xf32>
    %77 = arith.mulf %76, %70 : vector<8x128xf32>
    %78 = arith.addf %5, %77 : vector<8x128xf32>
    %c4_45 = arith.constant 4 : index
    %79 = memref.load %arg4[%c4_45] : memref<8xf32, #tpu.memory_space<smem>>
    %80 = vector.broadcast %79 : f32 to vector<8x128xf32>
    %81 = arith.mulf %80, %70 : vector<8x128xf32>
    %82 = arith.addf %7, %81 : vector<8x128xf32>
    %c6_46 = arith.constant 6 : index
    %83 = memref.load %arg4[%c6_46] : memref<8xf32, #tpu.memory_space<smem>>
    %84 = vector.broadcast %83 : f32 to vector<8x128xf32>
    %85 = arith.mulf %84, %70 : vector<8x128xf32>
    %86 = arith.addf %9, %85 : vector<8x128xf32>
    %c1_47 = arith.constant 1 : index
    %87 = memref.load %arg3[%c1_47] : memref<2xf32, #tpu.memory_space<smem>>
    %88 = vector.broadcast %87 : f32 to vector<8x128xf32>
    %c0_48 = arith.constant 0 : index
    %c1_49 = arith.constant 1 : index
    %c0_50 = arith.constant 0 : index
    %c0_51 = arith.constant 0 : index
    %89 = vector.load %arg1[%c0_48, %c1_49, %c0_50, %c0_51] : memref<1x8x9x129xf32, #tpu.memory_space<vmem>>, vector<1x1x8x128xf32>
    %90 = vector.shape_cast %89 : vector<1x1x8x128xf32> to vector<8x128xf32>
    %c9 = arith.constant 9 : index
    %91 = memref.load %arg2[%c9] : memref<18xf32, #tpu.memory_space<smem>>
    %92 = vector.broadcast %91 : f32 to vector<8x128xf32>
    %93 = arith.mulf %92, %90 : vector<8x128xf32>
    %94 = arith.addf %88, %93 : vector<8x128xf32>
    %c0_52 = arith.constant 0 : index
    %c3_53 = arith.constant 3 : index
    %c0_54 = arith.constant 0 : index
    %c0_55 = arith.constant 0 : index
    %95 = vector.load %arg1[%c0_52, %c3_53, %c0_54, %c0_55] : memref<1x8x9x129xf32, #tpu.memory_space<vmem>>, vector<1x1x8x128xf32>
    %96 = vector.shape_cast %95 : vector<1x1x8x128xf32> to vector<8x128xf32>
    %c10 = arith.constant 10 : index
    %97 = memref.load %arg2[%c10] : memref<18xf32, #tpu.memory_space<smem>>
    %98 = vector.broadcast %97 : f32 to vector<8x128xf32>
    %99 = arith.mulf %98, %96 : vector<8x128xf32>
    %100 = arith.addf %94, %99 : vector<8x128xf32>
    %c0_56 = arith.constant 0 : index
    %c1_57 = arith.constant 1 : index
    %c0_58 = arith.constant 0 : index
    %c1_59 = arith.constant 1 : index
    %101 = vector.load %arg1[%c0_56, %c1_57, %c0_58, %c1_59] : memref<1x8x9x129xf32, #tpu.memory_space<vmem>>, vector<1x1x8x128xf32>
    %102 = vector.shape_cast %101 : vector<1x1x8x128xf32> to vector<8x128xf32>
    %c11 = arith.constant 11 : index
    %103 = memref.load %arg2[%c11] : memref<18xf32, #tpu.memory_space<smem>>
    %104 = vector.broadcast %103 : f32 to vector<8x128xf32>
    %105 = arith.mulf %104, %102 : vector<8x128xf32>
    %106 = arith.addf %100, %105 : vector<8x128xf32>
    %c0_60 = arith.constant 0 : index
    %c5_61 = arith.constant 5 : index
    %c0_62 = arith.constant 0 : index
    %c0_63 = arith.constant 0 : index
    %107 = vector.load %arg1[%c0_60, %c5_61, %c0_62, %c0_63] : memref<1x8x9x129xf32, #tpu.memory_space<vmem>>, vector<1x1x8x128xf32>
    %108 = vector.shape_cast %107 : vector<1x1x8x128xf32> to vector<8x128xf32>
    %c12 = arith.constant 12 : index
    %109 = memref.load %arg2[%c12] : memref<18xf32, #tpu.memory_space<smem>>
    %110 = vector.broadcast %109 : f32 to vector<8x128xf32>
    %111 = arith.mulf %110, %108 : vector<8x128xf32>
    %112 = arith.addf %106, %111 : vector<8x128xf32>
    %c0_64 = arith.constant 0 : index
    %c7_65 = arith.constant 7 : index
    %c0_66 = arith.constant 0 : index
    %c0_67 = arith.constant 0 : index
    %113 = vector.load %arg1[%c0_64, %c7_65, %c0_66, %c0_67] : memref<1x8x9x129xf32, #tpu.memory_space<vmem>>, vector<1x1x8x128xf32>
    %114 = vector.shape_cast %113 : vector<1x1x8x128xf32> to vector<8x128xf32>
    %c13 = arith.constant 13 : index
    %115 = memref.load %arg2[%c13] : memref<18xf32, #tpu.memory_space<smem>>
    %116 = vector.broadcast %115 : f32 to vector<8x128xf32>
    %117 = arith.mulf %116, %114 : vector<8x128xf32>
    %118 = arith.addf %112, %117 : vector<8x128xf32>
    %c0_68 = arith.constant 0 : index
    %c5_69 = arith.constant 5 : index
    %c0_70 = arith.constant 0 : index
    %c1_71 = arith.constant 1 : index
    %119 = vector.load %arg1[%c0_68, %c5_69, %c0_70, %c1_71] : memref<1x8x9x129xf32, #tpu.memory_space<vmem>>, vector<1x1x8x128xf32>
    %120 = vector.shape_cast %119 : vector<1x1x8x128xf32> to vector<8x128xf32>
    %c14 = arith.constant 14 : index
    %121 = memref.load %arg2[%c14] : memref<18xf32, #tpu.memory_space<smem>>
    %122 = vector.broadcast %121 : f32 to vector<8x128xf32>
    %123 = arith.mulf %122, %120 : vector<8x128xf32>
    %124 = arith.addf %118, %123 : vector<8x128xf32>
    %c0_72 = arith.constant 0 : index
    %c1_73 = arith.constant 1 : index
    %c1_74 = arith.constant 1 : index
    %c0_75 = arith.constant 0 : index
    %125 = vector.load %arg1[%c0_72, %c1_73, %c1_74, %c0_75] : memref<1x8x9x129xf32, #tpu.memory_space<vmem>>, vector<1x1x8x128xf32>
    %126 = vector.shape_cast %125 : vector<1x1x8x128xf32> to vector<8x128xf32>
    %c15 = arith.constant 15 : index
    %127 = memref.load %arg2[%c15] : memref<18xf32, #tpu.memory_space<smem>>
    %128 = vector.broadcast %127 : f32 to vector<8x128xf32>
    %129 = arith.mulf %128, %126 : vector<8x128xf32>
    %130 = arith.addf %124, %129 : vector<8x128xf32>
    %c0_76 = arith.constant 0 : index
    %c3_77 = arith.constant 3 : index
    %c1_78 = arith.constant 1 : index
    %c0_79 = arith.constant 0 : index
    %131 = vector.load %arg1[%c0_76, %c3_77, %c1_78, %c0_79] : memref<1x8x9x129xf32, #tpu.memory_space<vmem>>, vector<1x1x8x128xf32>
    %132 = vector.shape_cast %131 : vector<1x1x8x128xf32> to vector<8x128xf32>
    %c16 = arith.constant 16 : index
    %133 = memref.load %arg2[%c16] : memref<18xf32, #tpu.memory_space<smem>>
    %134 = vector.broadcast %133 : f32 to vector<8x128xf32>
    %135 = arith.mulf %134, %132 : vector<8x128xf32>
    %136 = arith.addf %130, %135 : vector<8x128xf32>
    %c0_80 = arith.constant 0 : index
    %c1_81 = arith.constant 1 : index
    %c1_82 = arith.constant 1 : index
    %c1_83 = arith.constant 1 : index
    %137 = vector.load %arg1[%c0_80, %c1_81, %c1_82, %c1_83] : memref<1x8x9x129xf32, #tpu.memory_space<vmem>>, vector<1x1x8x128xf32>
    %138 = vector.shape_cast %137 : vector<1x1x8x128xf32> to vector<8x128xf32>
    %c17 = arith.constant 17 : index
    %139 = memref.load %arg2[%c17] : memref<18xf32, #tpu.memory_space<smem>>
    %140 = vector.broadcast %139 : f32 to vector<8x128xf32>
    %141 = arith.mulf %140, %138 : vector<8x128xf32>
    %142 = arith.addf %136, %141 : vector<8x128xf32>
    %cst_84 = arith.constant 0.000000e+00 : f32
    %143 = vector.broadcast %cst_84 : f32 to vector<8x128xf32>
    %144 = arith.cmpf oge, %142, %143 : vector<8x128xf32>
    %145 = vector.broadcast %0 : f32 to vector<8x128xf32>
    %146 = arith.mulf %145, %142 : vector<8x128xf32>
    %147 = arith.select %144, %142, %146 : vector<8x128xi1>, vector<8x128xf32>
    %c1_85 = arith.constant 1 : index
    %148 = memref.load %arg4[%c1_85] : memref<8xf32, #tpu.memory_space<smem>>
    %149 = vector.broadcast %148 : f32 to vector<8x128xf32>
    %150 = arith.mulf %149, %147 : vector<8x128xf32>
    %151 = arith.addf %74, %150 : vector<8x128xf32>
    %c3_86 = arith.constant 3 : index
    %152 = memref.load %arg4[%c3_86] : memref<8xf32, #tpu.memory_space<smem>>
    %153 = vector.broadcast %152 : f32 to vector<8x128xf32>
    %154 = arith.mulf %153, %147 : vector<8x128xf32>
    %155 = arith.addf %78, %154 : vector<8x128xf32>
    %c5_87 = arith.constant 5 : index
    %156 = memref.load %arg4[%c5_87] : memref<8xf32, #tpu.memory_space<smem>>
    %157 = vector.broadcast %156 : f32 to vector<8x128xf32>
    %158 = arith.mulf %157, %147 : vector<8x128xf32>
    %159 = arith.addf %82, %158 : vector<8x128xf32>
    %c7_88 = arith.constant 7 : index
    %160 = memref.load %arg4[%c7_88] : memref<8xf32, #tpu.memory_space<smem>>
    %161 = vector.broadcast %160 : f32 to vector<8x128xf32>
    %162 = arith.mulf %161, %147 : vector<8x128xf32>
    %163 = arith.addf %86, %162 : vector<8x128xf32>
    %cst_89 = arith.constant 0.000000e+00 : f32
    %164 = vector.broadcast %cst_89 : f32 to vector<8x128xf32>
    %165 = arith.cmpf oge, %151, %164 : vector<8x128xf32>
    %166 = vector.broadcast %1 : f32 to vector<8x128xf32>
    %167 = arith.mulf %166, %151 : vector<8x128xf32>
    %168 = arith.select %165, %151, %167 : vector<8x128xi1>, vector<8x128xf32>
    %c0_90 = arith.constant 0 : index
    %c0_91 = arith.constant 0 : index
    %c0_92 = arith.constant 0 : index
    %c0_93 = arith.constant 0 : index
    %169 = vector.load %arg7[%c0_90, %c0_91, %c0_92, %c0_93] : memref<1x4x8x128xf32, #tpu.memory_space<vmem>>, vector<1x1x8x128xf32>
    %170 = vector.shape_cast %169 : vector<1x1x8x128xf32> to vector<8x128xf32>
    %171 = vector.shape_cast %168 : vector<8x128xf32> to vector<1x1x8x128xf32>
    tpu.vector_store %arg7[%c0_90, %c0_91, %c0_92, %c0_93], %171 {strides = array<i32>} : memref<1x4x8x128xf32, #tpu.memory_space<vmem>>, vector<1x1x8x128xf32>,
    %cst_94 = arith.constant 0.000000e+00 : f32
    %172 = vector.broadcast %cst_94 : f32 to vector<8x128xf32>
    %173 = arith.cmpf oge, %155, %172 : vector<8x128xf32>
    %174 = vector.broadcast %1 : f32 to vector<8x128xf32>
    %175 = arith.mulf %174, %155 : vector<8x128xf32>
    %176 = arith.select %173, %155, %175 : vector<8x128xi1>, vector<8x128xf32>
    %c0_95 = arith.constant 0 : index
    %c1_96 = arith.constant 1 : index
    %c0_97 = arith.constant 0 : index
    %c0_98 = arith.constant 0 : index
    %177 = vector.load %arg7[%c0_95, %c1_96, %c0_97, %c0_98] : memref<1x4x8x128xf32, #tpu.memory_space<vmem>>, vector<1x1x8x128xf32>
    %178 = vector.shape_cast %177 : vector<1x1x8x128xf32> to vector<8x128xf32>
    %179 = vector.shape_cast %176 : vector<8x128xf32> to vector<1x1x8x128xf32>
    tpu.vector_store %arg7[%c0_95, %c1_96, %c0_97, %c0_98], %179 {strides = array<i32>} : memref<1x4x8x128xf32, #tpu.memory_space<vmem>>, vector<1x1x8x128xf32>,
    %cst_99 = arith.constant 0.000000e+00 : f32
    %180 = vector.broadcast %cst_99 : f32 to vector<8x128xf32>
    %181 = arith.cmpf oge, %159, %180 : vector<8x128xf32>
    %182 = vector.broadcast %1 : f32 to vector<8x128xf32>
    %183 = arith.mulf %182, %159 : vector<8x128xf32>
    %184 = arith.select %181, %159, %183 : vector<8x128xi1>, vector<8x128xf32>
    %c0_100 = arith.constant 0 : index
    %c2_101 = arith.constant 2 : index
    %c0_102 = arith.constant 0 : index
    %c0_103 = arith.constant 0 : index
    %185 = vector.load %arg7[%c0_100, %c2_101, %c0_102, %c0_103] : memref<1x4x8x128xf32, #tpu.memory_space<vmem>>, vector<1x1x8x128xf32>
    %186 = vector.shape_cast %185 : vector<1x1x8x128xf32> to vector<8x128xf32>
    %187 = vector.shape_cast %184 : vector<8x128xf32> to vector<1x1x8x128xf32>
    tpu.vector_store %arg7[%c0_100, %c2_101, %c0_102, %c0_103], %187 {strides = array<i32>} : memref<1x4x8x128xf32, #tpu.memory_space<vmem>>, vector<1x1x8x128xf32>,
    %cst_104 = arith.constant 0.000000e+00 : f32
    %188 = vector.broadcast %cst_104 : f32 to vector<8x128xf32>
    %189 = arith.cmpf oge, %163, %188 : vector<8x128xf32>
    %190 = vector.broadcast %1 : f32 to vector<8x128xf32>
    %191 = arith.mulf %190, %163 : vector<8x128xf32>
    %192 = arith.select %189, %163, %191 : vector<8x128xi1>, vector<8x128xf32>
    %c0_105 = arith.constant 0 : index
    %c3_106 = arith.constant 3 : index
    %c0_107 = arith.constant 0 : index
    %c0_108 = arith.constant 0 : index
    %193 = vector.load %arg7[%c0_105, %c3_106, %c0_107, %c0_108] : memref<1x4x8x128xf32, #tpu.memory_space<vmem>>, vector<1x1x8x128xf32>
    %194 = vector.shape_cast %193 : vector<1x1x8x128xf32> to vector<8x128xf32>
    %195 = vector.shape_cast %192 : vector<8x128xf32> to vector<1x1x8x128xf32>
    tpu.vector_store %arg7[%c0_105, %c3_106, %c0_107, %c0_108], %195 {strides = array<i32>} : memref<1x4x8x128xf32, #tpu.memory_space<vmem>>, vector<1x1x8x128xf32>,
    return
  }
  func.func @transform_0(%arg0: i32) -> (i32, i32, i32, i32) {
    %c0_i32 = arith.constant 0 : i32
    %c0_i32_0 = arith.constant 0 : i32
    %c0_i32_1 = arith.constant 0 : i32
    %c0_i32_2 = arith.constant 0 : i32
    return %arg0, %c0_i32, %c0_i32_0, %c0_i32_1 : i32, i32, i32, i32
  }
  func.func @transform_1(%arg0: i32) -> i32 {
    %c0_i32 = arith.constant 0 : i32
    %c0_i32_0 = arith.constant 0 : i32
    return %c0_i32 : i32
  }
  func.func @transform_2(%arg0: i32) -> i32 {
    %c0_i32 = arith.constant 0 : i32
    %c0_i32_0 = arith.constant 0 : i32
    return %c0_i32 : i32
  }
  func.func @transform_3(%arg0: i32) -> i32 {
    %c0_i32 = arith.constant 0 : i32
    %c0_i32_0 = arith.constant 0 : i32
    return %c0_i32 : i32
  }
  func.func @transform_4(%arg0: i32) -> i32 {
    %c0_i32 = arith.constant 0 : i32
    %c0_i32_0 = arith.constant 0 : i32
    return %c0_i32 : i32
  }
  func.func @transform_5(%arg0: i32) -> i32 {
    %c0_i32 = arith.constant 0 : i32
    %c0_i32_0 = arith.constant 0 : i32
    return %c0_i32 : i32
  }
  func.func @transform_6(%arg0: i32) -> (i32, i32, i32, i32) {
    %c0_i32 = arith.constant 0 : i32
    %c0_i32_0 = arith.constant 0 : i32
    %c0_i32_1 = arith.constant 0 : i32
    %c0_i32_2 = arith.constant 0 : i32
    return %arg0, %c0_i32, %c0_i32_0, %c0_i32_1 : i32, i32, i32, i32
  }
}

</mosaic_0001>

<llo_original>
// kernel: tpu_custom_call.1
$region0: #{tpu_custom_call.1}
  #allocation0 [shape = 'u32[]', space=smem, size = 0x4, offset = 0x4, fixed_abs, tag = 'smem constant byte address 0x4 - core index']
  #allocation1 [shape = 'u32[72,128]{1,0:T(1,128)}', space=vmem, size = 0x9000, scoped, tag = 'internal scratch']
  %s0 = inlined_call_operand.vmem [shape: f32[1,8,9,129], index: 0, kind: input, shape index: {}]
  %s1 = inlined_call_operand.vmem [shape: f32[18], index: 1, kind: input, shape index: {}]
  %s2 = inlined_call_operand.vmem [shape: f32[2], index: 2, kind: input, shape index: {}]
  %s3 = inlined_call_operand.vmem [shape: f32[8], index: 3, kind: input, shape index: {}]
  %s4 = inlined_call_operand.vmem [shape: f32[4], index: 4, kind: input, shape index: {}]
  %s5 = inlined_call_operand.vmem [shape: f32[2], index: 5, kind: input, shape index: {}]
  %s6 = inlined_call_operand.hbm [shape: f32[1,4,8,128], index: 6, kind: output, shape index: {}]
  %s7 = sld [smem:[#allocation0]]
  $region54: #{tpu_custom_call.1} parent=0
    _
  %s9 = ssub.s32 1, %s7
  %s10 = scalar_select 0, %s9, %s7
  $region1: #{tpu_custom_call.1} parent=0
    #allocation2 [shape = 'u8[512]{0}', space=smem, size = 0x200, scoped, tag = 'input window, operand 1, single buffered']
    #allocation3 [shape = 's32[1]{0}', space=sflag, size = 0x4, scoped, tag = 'scoped memory for tpu_custom_call.1']
    #allocation4 [shape = 's32[1]{0}', space=sflag, size = 0x4, scoped, tag = 'scoped memory for tpu_custom_call.1']
    #allocation5 [shape = 'u8[512]{0}', space=smem, size = 0x200, scoped, tag = 'input window, operand 2, single buffered']
    #allocation6 [shape = 's32[1]{0}', space=sflag, size = 0x4, scoped, tag = 'scoped memory for tpu_custom_call.1']
    #allocation7 [shape = 'u8[512]{0}', space=smem, size = 0x200, scoped, tag = 'input window, operand 3, single buffered']
    #allocation8 [shape = 'u8[512]{0}', space=smem, size = 0x200, scoped, tag = 'input window, operand 4, single buffered']
    #allocation9 [shape = 's32[1]{0}', space=sflag, size = 0x4, scoped, tag = 'scoped memory for tpu_custom_call.1']
    #allocation10 [shape = 'u8[512]{0}', space=smem, size = 0x200, scoped, tag = 'input window, operand 5, single buffered']
    #allocation11 [shape = 'u8[16384]{0}', space=vmem, size = 0x4000, scoped, tag = 'output window, operand 0, single buffered']
    %11 = vsyncpa [#allocation4], 0
    %12 = vsyncpa [#allocation6], 0
    %13 = vsyncpa [#allocation9], 0
    %14 = vsyncpa [#allocation3], 0
    // Predicated region
    $region2: #{tpu_custom_call.1} parent=1 // pred_check
      _
    $region3: #{tpu_custom_call.1} parent=1 // pred_check_branch
      %16 = sbr.rel (0) target = $region5
    $region4: #{tpu_custom_call.1} parent=1 // pred_region
      _
    $region5: #{tpu_custom_call.1} parent=1 // pred_fallthru
      _
    // Predicated region
    $region6: #{tpu_custom_call.1} parent=1 // pred_check
      _
    $region7: #{tpu_custom_call.1} parent=1 // pred_check_branch
      %18 = sbr.rel (0) target = $region9
    $region8: #{tpu_custom_call.1} parent=1 // pred_region
      %20 = vsyncadd [#allocation4], 0
      %s22 = sshll.u32 %s1, 4
      %s23 = int_to_ptr.vmem [resolvable:$true] %s22
      %25 = dma.vmem_to_smem %s23, 16, [#allocation2], [#allocation4]
    $region9: #{tpu_custom_call.1} parent=1 // pred_fallthru
      _
    // Predicated region
    $region10: #{tpu_custom_call.1} parent=1 // pred_check
      _
    $region11: #{tpu_custom_call.1} parent=1 // pred_check_branch
      %27 = sbr.rel (0) target = $region13
    $region12: #{tpu_custom_call.1} parent=1 // pred_region
      %29 = vsyncadd [#allocation6], 0
      %s31 = sshll.u32 %s2, 4
      %s32 = int_to_ptr.vmem [resolvable:$true] %s31
      %34 = dma.vmem_to_smem %s32, 16, [#allocation5], [#allocation6]
    $region13: #{tpu_custom_call.1} parent=1 // pred_fallthru
      _
    // Predicated region
    $region14: #{tpu_custom_call.1} parent=1 // pred_check
      _
    $region15: #{tpu_custom_call.1} parent=1 // pred_check_branch
      %36 = sbr.rel (0) target = $region17
    $region16: #{tpu_custom_call.1} parent=1 // pred_region
      %38 = vsyncadd [#allocation6], 0
      %s40 = sshll.u32 %s3, 4
      %s41 = int_to_ptr.vmem [resolvable:$true] %s40
      %43 = dma.vmem_to_smem %s41, 16, [#allocation7], [#allocation6]
    $region17: #{tpu_custom_call.1} parent=1 // pred_fallthru
      _
    // Predicated region
    $region18: #{tpu_custom_call.1} parent=1 // pred_check
      _
    $region19: #{tpu_custom_call.1} parent=1 // pred_check_branch
      %45 = sbr.rel (0) target = $region21
    $region20: #{tpu_custom_call.1} parent=1 // pred_region
      %47 = vsyncadd [#allocation9], 0
      %s49 = sshll.u32 %s4, 4
      %s50 = int_to_ptr.vmem [resolvable:$true] %s49
      %52 = dma.vmem_to_smem %s50, 16, [#allocation8], [#allocation9]
    $region21: #{tpu_custom_call.1} parent=1 // pred_fallthru
      _
    // Predicated region
    $region22: #{tpu_custom_call.1} parent=1 // pred_check
      _
    $region23: #{tpu_custom_call.1} parent=1 // pred_check_branch
      %54 = sbr.rel (0) target = $region25
    $region24: #{tpu_custom_call.1} parent=1 // pred_region
      %56 = vsyncadd [#allocation9], 0
      %s58 = sshll.u32 %s5, 4
      %s59 = int_to_ptr.vmem [resolvable:$true] %s58
      %61 = dma.vmem_to_smem %s59, 16, [#allocation10], [#allocation9]
    $region25: #{tpu_custom_call.1} parent=1 // pred_fallthru
      _
    // Predicated region
    $region26: #{tpu_custom_call.1} parent=1 // pred_check
      _
    $region27: #{tpu_custom_call.1} parent=1 // pred_check_branch
      %63 = sbr.rel (0) target = $region29
    $region28: #{tpu_custom_call.1} parent=1 // pred_region
      %65 = dma.done [#allocation4], 16
    $region29: #{tpu_custom_call.1} parent=1 // pred_fallthru
      _
    // Predicated region
    $region30: #{tpu_custom_call.1} parent=1 // pred_check
      _
    $region31: #{tpu_custom_call.1} parent=1 // pred_check_branch
      %67 = sbr.rel (0) target = $region33
    $region32: #{tpu_custom_call.1} parent=1 // pred_region
      %69 = dma.done [#allocation6], 16
    $region33: #{tpu_custom_call.1} parent=1 // pred_fallthru
      _
    // Predicated region
    $region34: #{tpu_custom_call.1} parent=1 // pred_check
      _
    $region35: #{tpu_custom_call.1} parent=1 // pred_check_branch
      %71 = sbr.rel (0) target = $region37
    $region36: #{tpu_custom_call.1} parent=1 // pred_region
      %73 = dma.done [#allocation6], 16
    $region37: #{tpu_custom_call.1} parent=1 // pred_fallthru
      _
    // Predicated region
    $region38: #{tpu_custom_call.1} parent=1 // pred_check
      _
    $region39: #{tpu_custom_call.1} parent=1 // pred_check_branch
      %75 = sbr.rel (0) target = $region41
    $region40: #{tpu_custom_call.1} parent=1 // pred_region
      %77 = dma.done [#allocation9], 16
    $region41: #{tpu_custom_call.1} parent=1 // pred_fallthru
      _
    // Predicated region
    $region42: #{tpu_custom_call.1} parent=1 // pred_check
      _
    $region43: #{tpu_custom_call.1} parent=1 // pred_check_branch
      %79 = sbr.rel (0) target = $region45
    $region44: #{tpu_custom_call.1} parent=1 // pred_region
      %81 = dma.done [#allocation9], 16
    $region45: #{tpu_custom_call.1} parent=1 // pred_fallthru
      _
    %82 = sfence
    %s83 = sld [smem:[#allocation10]]
    %s84 = sld [smem:[#allocation10 + $0x1]]
    %s85 = sld [smem:[#allocation8]]
    %v86 = vstv %s85
    %s87 = sld [smem:[#allocation8 + $0x1]]
    %v88 = vstv %s87
    %s89 = sld [smem:[#allocation8 + $0x2]]
    %v90 = vstv %s89
    %s91 = sld [smem:[#allocation8 + $0x3]]
    %v92 = vstv %s91
    %s93 = sld [smem:[#allocation5]]
    %v94 = vstv %s93
    %v95 = vld [vmem:[%s0] sm:$0xff]
    %s96 = sld [smem:[#allocation2]]
    %v97 = vstv %s96
    %v98 = vmul.f32 %v97, %v95
    %v99 = vadd.f32 %v94, %v98
    %s100 = scalar_lea.vmem %s0, 64
    %v101 = vld [vmem:[%s100] sm:$0xff]
    %s102 = sld [smem:[#allocation2 + $0x1]]
    %v103 = vstv %s102
    %v104 = vmul.f32 %v103, %v101
    %v105 = vadd.f32 %v99, %v104
    %v106 = vld [vmem:[%s0] sm:$0xff]
    %v107 = vld [vmem:[%s0 + $0x8] sm:$0xff]
    %s108 = sld [smem:[#allocation2 + $0x2]]
    %v109 = vstv %s108
    %v110 = vmul.f32 %v109, %v106
    %v111 = vmul.f32 %v109, %v107
    %114 = vrot.lane.b32.xlu0 %v110, 127
    %v115 = vpop.permute.xlu0 %114
    %116 = vrot.lane.b32.xlu0 %v111, 127
    %v117 = vpop.permute.xlu0 %116
    %vm118 = vcmask 1039360
    %v119 = vsel %vm118, %v115, %v117
    %v121 = vadd.f32 %v105, %v119
    %s122 = scalar_lea.vmem %s0, 128
    %v123 = vld [vmem:[%s122] sm:$0xff]
    %s124 = sld [smem:[#allocation2 + $0x3]]
    %v125 = vstv %s124
    %v126 = vmul.f32 %v125, %v123
    %v127 = vadd.f32 %v121, %v126
    %s128 = scalar_lea.vmem %s0, 192
    %v129 = vld [vmem:[%s128] sm:$0xff]
    %s130 = sld [smem:[#allocation2 + $0x4]]
    %v131 = vstv %s130
    %v132 = vmul.f32 %v131, %v129
    %v133 = vadd.f32 %v127, %v132
    %v134 = vld [vmem:[%s122] sm:$0xff]
    %v135 = vld [vmem:[%s122 + $0x8] sm:$0xff]
    %s136 = sld [smem:[#allocation2 + $0x5]]
    %v137 = vstv %s136
    %v138 = vmul.f32 %v137, %v134
    %v139 = vmul.f32 %v137, %v135
    %142 = vrot.lane.b32.xlu0 %v138, 127
    %v143 = vpop.permute.xlu0 %142
    %144 = vrot.lane.b32.xlu0 %v139, 127
    %v145 = vpop.permute.xlu0 %144
    %v146 = vsel %vm118, %v143, %v145
    %v148 = vadd.f32 %v133, %v146
    %v149 = vld [vmem:[%s0] sm:$0xfe]
    %v150 = vld [vmem:[%s0 + $0x10] sm:$0x1]
    %s151 = sld [smem:[#allocation2 + $0x6]]
    %v152 = vstv %s151
    %v153 = vmul.f32 %v152, %v149
    %v154 = vmul.f32 %v152, %v150
    %vm157 = vcmask 1046528
    %v158 = vrot.slane %v153, 1
    %v159 = vrot.slane %v154, 1
    %v160 = vsel %vm157, %v158, %v159
    %v162 = vadd.f32 %v148, %v160
    %v163 = vld [vmem:[%s100] sm:$0xfe]
    %v164 = vld [vmem:[%s100 + $0x10] sm:$0x1]
    %s165 = sld [smem:[#allocation2 + $0x7]]
    %v166 = vstv %s165
    %v167 = vmul.f32 %v166, %v163
    %v168 = vmul.f32 %v166, %v164
    %v171 = vrot.slane %v167, 1
    %v172 = vrot.slane %v168, 1
    %v173 = vsel %vm157, %v171, %v172
    %v175 = vadd.f32 %v162, %v173
    %v176 = vld [vmem:[%s0] sm:$0xfe]
    %v177 = vld [vmem:[%s0 + $0x8] sm:$0xfe]
    %v178 = vld [vmem:[%s0 + $0x10] sm:$0x1]
    %v179 = vld [vmem:[%s0 + $0x18] sm:$0x1]
    %s180 = sld [smem:[#allocation2 + $0x8]]
    %v181 = vstv %s180
    %v182 = vmul.f32 %v181, %v176
    %v183 = vmul.f32 %v181, %v177
    %v184 = vmul.f32 %v181, %v178
    %v185 = vmul.f32 %v181, %v179
    %v190 = vrot.slane %v182, 1
    %v191 = vrot.slane %v184, 1
    %v192 = vsel %vm157, %v190, %v191
    %v193 = vrot.slane %v183, 1
    %v194 = vrot.slane %v185, 1
    %v195 = vsel %vm157, %v193, %v194
    %196 = vrot.lane.b32.xlu0 %v192, 127
    %v197 = vpop.permute.xlu0 %196
    %198 = vrot.lane.b32.xlu0 %v195, 127
    %v199 = vpop.permute.xlu0 %198
    %v200 = vsel %vm118, %v197, %v199
    %v202 = vadd.f32 %v175, %v200
    %vm203 = vcmp.ge.f32.partialorder %v202, 0.0
    %v204 = vstv %s83
    %v205 = vmul.f32 %v204, %v202
    %v206 = vsel %vm203, %v202, %v205
    %s207 = sld [smem:[#allocation7]]
    %v208 = vstv %s207
    %v209 = vmul.f32 %v208, %v206
    %v210 = vadd.f32 %v86, %v209
    %s211 = sld [smem:[#allocation7 + $0x2]]
    %v212 = vstv %s211
    %v213 = vmul.f32 %v212, %v206
    %v214 = vadd.f32 %v88, %v213
    %s215 = sld [smem:[#allocation7 + $0x4]]
    %v216 = vstv %s215
    %v217 = vmul.f32 %v216, %v206
    %v218 = vadd.f32 %v90, %v217
    %s219 = sld [smem:[#allocation7 + $0x6]]
    %v220 = vstv %s219
    %v221 = vmul.f32 %v220, %v206
    %v222 = vadd.f32 %v92, %v221
    %s223 = sld [smem:[#allocation5 + $0x1]]
    %v224 = vstv %s223
    %s225 = scalar_lea.vmem %s0, 32
    %v226 = vld [vmem:[%s225] sm:$0xff]
    %s227 = sld [smem:[#allocation2 + $0x9]]
    %v228 = vstv %s227
    %v229 = vmul.f32 %v228, %v226
    %v230 = vadd.f32 %v224, %v229
    %s231 = scalar_lea.vmem %s0, 96
    %v232 = vld [vmem:[%s231] sm:$0xff]
    %s233 = sld [smem:[#allocation2 + $0xa]]
    %v234 = vstv %s233
    %v235 = vmul.f32 %v234, %v232
    %v236 = vadd.f32 %v230, %v235
    %v237 = vld [vmem:[%s225] sm:$0xff]
    %v238 = vld [vmem:[%s225 + $0x8] sm:$0xff]
    %s239 = sld [smem:[#allocation2 + $0xb]]
    %v240 = vstv %s239
    %v241 = vmul.f32 %v240, %v237
    %v242 = vmul.f32 %v240, %v238
    %245 = vrot.lane.b32.xlu0 %v241, 127
    %v246 = vpop.permute.xlu0 %245
    %247 = vrot.lane.b32.xlu0 %v242, 127
    %v248 = vpop.permute.xlu0 %247
    %v249 = vsel %vm118, %v246, %v248
    %v251 = vadd.f32 %v236, %v249
    %s252 = scalar_lea.vmem %s0, 160
    %v253 = vld [vmem:[%s252] sm:$0xff]
    %s254 = sld [smem:[#allocation2 + $0xc]]
    %v255 = vstv %s254
    %v256 = vmul.f32 %v255, %v253
    %v257 = vadd.f32 %v251, %v256
    %s258 = scalar_lea.vmem %s0, 224
    %v259 = vld [vmem:[%s258] sm:$0xff]
    %s260 = sld [smem:[#allocation2 + $0xd]]
    %v261 = vstv %s260
    %v262 = vmul.f32 %v261, %v259
    %v263 = vadd.f32 %v257, %v262
    %v264 = vld [vmem:[%s252] sm:$0xff]
    %v265 = vld [vmem:[%s252 + $0x8] sm:$0xff]
    %s266 = sld [smem:[#allocation2 + $0xe]]
    %v267 = vstv %s266
    %v268 = vmul.f32 %v267, %v264
    %v269 = vmul.f32 %v267, %v265
    %272 = vrot.lane.b32.xlu0 %v268, 127
    %v273 = vpop.permute.xlu0 %272
    %274 = vrot.lane.b32.xlu0 %v269, 127
    %v275 = vpop.permute.xlu0 %274
    %v276 = vsel %vm118, %v273, %v275
    %v278 = vadd.f32 %v263, %v276
    %v279 = vld [vmem:[%s225] sm:$0xfe]
    %v280 = vld [vmem:[%s225 + $0x10] sm:$0x1]
    %s281 = sld [smem:[#allocation2 + $0xf]]
    %v282 = vstv %s281
    %v283 = vmul.f32 %v282, %v279
    %v284 = vmul.f32 %v282, %v280
    %v287 = vrot.slane %v283, 1
    %v288 = vrot.slane %v284, 1
    %v289 = vsel %vm157, %v287, %v288
    %v291 = vadd.f32 %v278, %v289
    %v292 = vld [vmem:[%s231] sm:$0xfe]
    %v293 = vld [vmem:[%s231 + $0x10] sm:$0x1]
    %s294 = sld [smem:[#allocation2 + $0x10]]
    %v295 = vstv %s294
    %v296 = vmul.f32 %v295, %v292
    %v297 = vmul.f32 %v295, %v293
    %v300 = vrot.slane %v296, 1
    %v301 = vrot.slane %v297, 1
    %v302 = vsel %vm157, %v300, %v301
    %v304 = vadd.f32 %v291, %v302
    %v305 = vld [vmem:[%s225] sm:$0xfe]
    %v306 = vld [vmem:[%s225 + $0x8] sm:$0xfe]
    %v307 = vld [vmem:[%s225 + $0x10] sm:$0x1]
    %v308 = vld [vmem:[%s225 + $0x18] sm:$0x1]
    %s309 = sld [smem:[#allocation2 + $0x11]]
    %v310 = vstv %s309
    %v311 = vmul.f32 %v310, %v305
    %v312 = vmul.f32 %v310, %v306
    %v313 = vmul.f32 %v310, %v307
    %v314 = vmul.f32 %v310, %v308
    %v319 = vrot.slane %v311, 1
    %v320 = vrot.slane %v313, 1
    %v321 = vsel %vm157, %v319, %v320
    %v322 = vrot.slane %v312, 1
    %v323 = vrot.slane %v314, 1
    %v324 = vsel %vm157, %v322, %v323
    %325 = vrot.lane.b32.xlu0 %v321, 127
    %v326 = vpop.permute.xlu0 %325
    %327 = vrot.lane.b32.xlu0 %v324, 127
    %v328 = vpop.permute.xlu0 %327
    %v329 = vsel %vm118, %v326, %v328
    %v331 = vadd.f32 %v304, %v329
    %vm332 = vcmp.ge.f32.partialorder %v331, 0.0
    %v333 = vmul.f32 %v204, %v331
    %v334 = vsel %vm332, %v331, %v333
    %s335 = sld [smem:[#allocation7 + $0x1]]
    %v336 = vstv %s335
    %v337 = vmul.f32 %v336, %v334
    %v338 = vadd.f32 %v210, %v337
    %s339 = sld [smem:[#allocation7 + $0x3]]
    %v340 = vstv %s339
    %v341 = vmul.f32 %v340, %v334
    %v342 = vadd.f32 %v214, %v341
    %s343 = sld [smem:[#allocation7 + $0x5]]
    %v344 = vstv %s343
    %v345 = vmul.f32 %v344, %v334
    %v346 = vadd.f32 %v218, %v345
    %s347 = sld [smem:[#allocation7 + $0x7]]
    %v348 = vstv %s347
    %v349 = vmul.f32 %v348, %v334
    %v350 = vadd.f32 %v222, %v349
    %vm351 = vcmp.ge.f32.partialorder %v338, 0.0
    %v352 = vstv %s84
    %v353 = vmul.f32 %v352, %v338
    %v354 = vsel %vm351, %v338, %v353
    %355 = vst [vmem:[#allocation11] sm:$0xff] %v354
    %vm356 = vcmp.ge.f32.partialorder %v342, 0.0
    %v357 = vmul.f32 %v352, %v342
    %v358 = vsel %vm356, %v342, %v357
    %s359 = scalar_lea.vmem [#allocation11], 8
    %360 = vst [vmem:[%s359] sm:$0xff] %v358
    %vm361 = vcmp.ge.f32.partialorder %v346, 0.0
    %v362 = vmul.f32 %v352, %v346
    %v363 = vsel %vm361, %v346, %v362
    %s364 = scalar_lea.vmem [#allocation11], 16
    %365 = vst [vmem:[%s364] sm:$0xff] %v363
    %vm366 = vcmp.ge.f32.partialorder %v350, 0.0
    %v367 = vmul.f32 %v352, %v350
    %v368 = vsel %vm366, %v350, %v367
    %s369 = scalar_lea.vmem [#allocation11], 24
    %370 = vst [vmem:[%s369] sm:$0xff] %v368
    // Predicated region
    $region46: #{tpu_custom_call.1} parent=1 // pred_check
      _
    $region47: #{tpu_custom_call.1} parent=1 // pred_check_branch
      %372 = sbr.rel (0) target = $region49
    $region48: #{tpu_custom_call.1} parent=1 // pred_region
      %374 = vsyncadd [#allocation3], 0
      %s375 = sshll.u32 [#allocation11], 4
      %s376 = int_to_ptr.vmem [resolvable:$true] %s375
      %s377 = sshll.u32 %s6, 4
      %s378 = int_to_ptr.hbm [resolvable:$true] %s377
      %383 = dma.vmem_to_hbm [thread:$0]  %s376, 512, %s378, [#allocation3], 128, 128, 8
    $region49: #{tpu_custom_call.1} parent=1 // pred_fallthru
      _
    // Predicated region
    $region50: #{tpu_custom_call.1} parent=1 // pred_check
      _
    $region51: #{tpu_custom_call.1} parent=1 // pred_check_branch
      %385 = sbr.rel (0) target = $region53
    $region52: #{tpu_custom_call.1} parent=1 // pred_region
      %387 = dma.done [#allocation3], 512
    $region53: #{tpu_custom_call.1} parent=1 // pred_fallthru
      _
    %388 = vsyncpa [#allocation3], 1
    %389 = vsyncpa [#allocation4], 1
    %390 = vsyncpa [#allocation6], 1
    %391 = vsyncpa [#allocation9], 1

</llo_original>
